<compile_context>
chip_gen: v7x
topology: tpu7x:2x2x1
jax: 0.10.0
libtpu: 0.0.40
codegen_flags: <defaults>
</compile_context>

<pallas_src>
import functools

import jax
import jax.numpy as jnp
from jax.experimental import pallas as pl
from jax.experimental.pallas import tpu as pltpu

LANE = 128                      # TPU vreg lane width
_PREFERRED_BATCH_TILE = 2048    # rows per grid step for large batches (~3-4 MiB/step)


def _round_up(n, m):
    return ((n + m - 1) // m) * m


def _pick_batch_tile(B, preferred=_PREFERRED_BATCH_TILE):
    """Static (trace-time) batch-tile choice.

    - Large B: cap at `preferred` (grid automatically has >= 2 steps).
    - Mid-size B: split into two tiles so v7x's second TensorCore gets work via the
      "parallel" grid axis.
    - Small B: one tile covering the whole (ragged) batch.
    """
    if B >= 2 * preferred:
        return preferred
    if B >= 512:
        return _round_up(pl.cdiv(B, 2), 8)
    return max(_round_up(B, 8), 8)


def _predictor_kernel(x_ref,
                      w_enc_ref, b_enc_ref,
                      w_op_ref, b_op_ref,
                      w_dec_ref, b_dec_ref,
                      w_fin_ref, b_fin_ref,
                      out_ref):
    """Fused forward pass for one batch tile. All four matmuls hit the MXU in bf16
    with fp32 accumulation; intermediates never leave VMEM."""
    # fp32 -> bf16 cast happens here (VPU), not as a separate XLA op in the wrapper.
    x = x_ref[...].astype(jnp.bfloat16)

    # encoder: Linear + ReLU
    h = jnp.dot(x, w_enc_ref[...], preferred_element_type=jnp.float32) + b_enc_ref[...]
    h = jnp.maximum(h, 0.0).astype(jnp.bfloat16)

    # operator: Linear + ReLU
    h = jnp.dot(h, w_op_ref[...], preferred_element_type=jnp.float32) + b_op_ref[...]
    h = jnp.maximum(h, 0.0).astype(jnp.bfloat16)

    # decoder: Linear + ReLU
    h = jnp.dot(h, w_dec_ref[...], preferred_element_type=jnp.float32) + b_dec_ref[...]
    h = jnp.maximum(h, 0.0).astype(jnp.bfloat16)

    # final_linear: Linear (no activation)
    out = jnp.dot(h, w_fin_ref[...], preferred_element_type=jnp.float32) + b_fin_ref[...]
    out_ref[...] = out.astype(out_ref.dtype)


def _pad2(a, rows, cols):
    r, c = a.shape
    return jnp.pad(a, ((0, rows - r), (0, cols - c)))


def prepare_params(params):
    """One-time (hoisted out of the per-call path) padding + casting of parameters.

    Every fan_out is zero-padded to a multiple of 128 lanes (lane-dense activations,
    unmasked stores, fully fed MXU N); the encoder fan_in is left at D_in so it matches
    the raw, unpadded x. Weights go to bf16 (MXU-native); biases stay fp32 (added to the
    fp32 accumulator in-kernel). Zero rows/columns are mathematically inert.

    Returns (prepared_param_dict, d_out) where d_out is the true output width.
    """
    d_in, d_hid = params["w_enc"].shape
    d_dec = params["w_dec"].shape[1]
    d_out = params["w_fin"].shape[1]
    d_hid_p = _round_up(d_hid, LANE)
    d_dec_p = _round_up(d_dec, LANE)
    d_out_p = _round_up(d_out, LANE)

    bf16 = jnp.bfloat16
    prepared = dict(
        w_enc=_pad2(params["w_enc"], d_in, d_hid_p).astype(bf16),
        b_enc=_pad2(params["b_enc"], 1, d_hid_p),
        w_op=_pad2(params["w_op"], d_hid_p, d_hid_p).astype(bf16),
        b_op=_pad2(params["b_op"], 1, d_hid_p),
        w_dec=_pad2(params["w_dec"], d_hid_p, d_dec_p).astype(bf16),
        b_dec=_pad2(params["b_dec"], 1, d_dec_p),
        w_fin=_pad2(params["w_fin"], d_dec_p, d_out_p).astype(bf16),
        b_fin=_pad2(params["b_fin"], 1, d_out_p),
    )
    return prepared, d_out


@functools.partial(jax.jit, static_argnames=("d_out", "batch_tile", "out_dtype"))
def predictor_forward(x, prepared, *, d_out, batch_tile=None, out_dtype=jnp.bfloat16):
    """Fused Predictor forward pass.

    x: (B, D_in) float32 — any B; the ragged last grid block is masked by Pallas
       (no batch zero-padding, no padded copy of x is ever materialized).
    prepared: output of prepare_params (padded/cast once, reused across calls).
    d_out: true output width (static).
    batch_tile: rows per grid step; None -> auto (2048 for large B, split in two for
       mid-size B so both v7x TensorCores get work, whole batch for small B).
    out_dtype: bf16 by default (halves the dominant HBM write stream; the output stays
       lane-dense 128-wide in HBM and is sliced back to d_out here).
    """
    B, d_in = x.shape
    w_enc, b_enc = prepared["w_enc"], prepared["b_enc"]
    w_op, b_op = prepared["w_op"], prepared["b_op"]
    w_dec, b_dec = prepared["w_dec"], prepared["b_dec"]
    w_fin, b_fin = prepared["w_fin"], prepared["b_fin"]
    assert w_enc.shape[0] == d_in, "encoder fan_in must match x feature dim"
    d_out_p = w_fin.shape[1]

    if batch_tile is None:
        batch_tile = _pick_batch_tile(B)

    grid = (pl.cdiv(B, batch_tile),)

    def resident(shape):
        # Whole-array block with a grid-independent index_map: DMA'd once, kept
        # resident in VMEM across all batch tiles (pipeliner skips repeat copies).
        return pl.BlockSpec(shape, lambda i: (0, 0))

    out_p = pl.pallas_call(
        _predictor_kernel,
        out_shape=jax.ShapeDtypeStruct((B, d_out_p), out_dtype),
        grid=grid,
        in_specs=[
            # x block: last dim equals the full array dim (legal under the (8,128)
            # rule), sublane dim is a multiple of 8; ragged last block is masked.
            pl.BlockSpec((batch_tile, d_in), lambda i: (i, 0)),
            resident(w_enc.shape), resident(b_enc.shape),
            resident(w_op.shape), resident(b_op.shape),
            resident(w_dec.shape), resident(b_dec.shape),
            resident(w_fin.shape), resident(b_fin.shape),
        ],
        out_specs=pl.BlockSpec((batch_tile, d_out_p), lambda i: (i, 0)),
        compiler_params=pltpu.CompilerParams(
            # Batch tiles are independent -> shards across v7x's 2 TensorCores when
            # the grid has >= 2 steps (guaranteed by _pick_batch_tile for B >= 512).
            dimension_semantics=("parallel",),
            # ~3-4 MiB per step at batch_tile=2048: safe under v7x's 64 MiB physical
            # VMEM as well as v5e/v6e's 128 MiB.
            vmem_limit_bytes=32 * 1024 * 1024,
        ),
    )(x, w_enc, b_enc, w_op, b_op, w_dec, b_dec, w_fin, b_fin)

    # Slice off the lane padding (tiny bf16 copy). Callers that can consume the padded
    # 128-wide output directly should skip this slice.
    return out_p[:, :d_out]


def init_params(key, d_in, d_hidden, d_dec, d_out):
    """Deterministic PyTorch-style init: U(-1/sqrt(fan_in), 1/sqrt(fan_in))."""
    def linear(key, fan_in, fan_out):
        kw, kb = jax.random.split(key)
        bound = 1.0 / jnp.sqrt(fan_in)
        w = jax.random.uniform(kw, (fan_in, fan_out), jnp.float32, -bound, bound)
        b = jax.random.uniform(kb, (1, fan_out), jnp.float32, -bound, bound)
        return w, b

    k1, k2, k3, k4 = jax.random.split(key, 4)
    w_enc, b_enc = linear(k1, d_in, d_hidden)
    w_op, b_op = linear(k2, d_hidden, d_hidden)
    w_dec, b_dec = linear(k3, d_hidden, d_dec)
    w_fin, b_fin = linear(k4, d_dec, d_out)
    return dict(w_enc=w_enc, b_enc=b_enc, w_op=w_op, b_op=b_op,
                w_dec=w_dec, b_dec=b_dec, w_fin=w_fin, b_fin=b_fin)


def predictor_reference(x, p):
    """Pure-JAX fp32 reference of the same forward pass (for correctness check)."""
    h = jnp.maximum(x @ p["w_enc"] + p["b_enc"], 0.0)
    h = jnp.maximum(h @ p["w_op"] + p["b_op"], 0.0)
    h = jnp.maximum(h @ p["w_dec"] + p["b_dec"], 0.0)
    return h @ p["w_fin"] + p["b_fin"]


if __name__ == "__main__":
    # Small shapes consistent with the module:
    #   encoder input dim = 32, hidden = 64, decoder output = final_linear_input_dim = 48,
    #   final_linear_output_dim = 16, batch = 8 (one small grid step; large batches tile
    #   at up to 2048 rows/step and shard across TensorCores automatically).
    B, D_IN, D_HID, D_DEC, D_OUT = 8, 32, 64, 48, 16

    key = jax.random.PRNGKey(0)
    kx, kp = jax.random.split(key)
    x = jax.random.normal(kx, (B, D_IN), dtype=jnp.float32)
    params = init_params(kp, D_IN, D_HID, D_DEC, D_OUT)

    # One-time parameter preparation (padding + bf16 cast), reused across calls.
    prepared, d_out = prepare_params(params)

    out = predictor_forward(x, prepared, d_out=d_out)
    out = jax.block_until_ready(out)

    ref = predictor_reference(x, params)
    assert out.shape == (B, D_OUT)
    # bf16 matmuls / intermediates / output vs fp32 reference -> loosened tolerance.
    assert jnp.allclose(out.astype(jnp.float32), ref, atol=5e-2, rtol=5e-2), \
        "Pallas output mismatch vs reference"

    print("KERNEL_OK")
</pallas_src>

<mosaic_0001>
module attributes {stable_mosaic.version = 11 : i64} {
  func.func @_predictor_kernel(%arg0: i32, %arg1: memref<8x32xf32, #tpu.memory_space<vmem>>, %arg2: memref<32x128xbf16, #tpu.memory_space<vmem>>, %arg3: memref<1x128xf32, #tpu.memory_space<vmem>>, %arg4: memref<128x128xbf16, #tpu.memory_space<vmem>>, %arg5: memref<1x128xf32, #tpu.memory_space<vmem>>, %arg6: memref<128x128xbf16, #tpu.memory_space<vmem>>, %arg7: memref<1x128xf32, #tpu.memory_space<vmem>>, %arg8: memref<128x128xbf16, #tpu.memory_space<vmem>>, %arg9: memref<1x128xf32, #tpu.memory_space<vmem>>, %arg10: memref<8x128xbf16, #tpu.memory_space<vmem>>) attributes {dimension_semantics = [#tpu.dimension_semantics<parallel>], iteration_bounds = array<i64: 1>, scalar_prefetch = 0 : i64, scratch_operands = 0 : i64, tpu.core_type = #tpu.core_type<tc>, window_params = [{transform_indices = @transform_0, window_bounds = array<i64: 8, 32>}, {pipeline_mode = #tpu.pipeline_mode<synchronous>, transform_indices = @transform_1, window_bounds = array<i64: 32, 128>}, {pipeline_mode = #tpu.pipeline_mode<synchronous>, transform_indices = @transform_2, window_bounds = array<i64: 1, 128>}, {pipeline_mode = #tpu.pipeline_mode<synchronous>, transform_indices = @transform_3, window_bounds = array<i64: 128, 128>}, {pipeline_mode = #tpu.pipeline_mode<synchronous>, transform_indices = @transform_4, window_bounds = array<i64: 1, 128>}, {pipeline_mode = #tpu.pipeline_mode<synchronous>, transform_indices = @transform_5, window_bounds = array<i64: 128, 128>}, {pipeline_mode = #tpu.pipeline_mode<synchronous>, transform_indices = @transform_6, window_bounds = array<i64: 1, 128>}, {pipeline_mode = #tpu.pipeline_mode<synchronous>, transform_indices = @transform_7, window_bounds = array<i64: 128, 128>}, {pipeline_mode = #tpu.pipeline_mode<synchronous>, transform_indices = @transform_8, window_bounds = array<i64: 1, 128>}, {transform_indices = @transform_9, window_bounds = array<i64: 8, 128>}]} {
    %c0 = arith.constant 0 : index
    %c0_0 = arith.constant 0 : index
    %0 = vector.load %arg1[%c0, %c0_0] : memref<8x32xf32, #tpu.memory_space<vmem>>, vector<8x32xf32>
    %1 = arith.truncf %0 : vector<8x32xf32> to vector<8x32xbf16>
    %c0_1 = arith.constant 0 : index
    %c0_2 = arith.constant 0 : index
    %2 = vector.load %arg2[%c0_1, %c0_2] : memref<32x128xbf16, #tpu.memory_space<vmem>>, vector<32x128xbf16>
    %cst = arith.constant dense<0.000000e+00> : vector<8x128xf32>
    %3 = tpu.matmul %1, %2, %cst {dimension_numbers = #tpu.dot_dimension_numbers<[1], [0], [0], [1], [0, 0, 1, 1], [], []>} : vector<8x32xbf16>, vector<32x128xbf16>, vector<8x128xf32> -> vector<8x128xf32>
    %c0_3 = arith.constant 0 : index
    %c0_4 = arith.constant 0 : index
    %4 = vector.load %arg3[%c0_3, %c0_4] : memref<1x128xf32, #tpu.memory_space<vmem>>, vector<1x128xf32>
    %5 = vector.broadcast %4 : vector<1x128xf32> to vector<8x128xf32>
    %6 = arith.addf %3, %5 : vector<8x128xf32>
    %cst_5 = arith.constant 0.000000e+00 : f32
    %7 = vector.broadcast %cst_5 : f32 to vector<8x128xf32>
    %8 = arith.maximumf %6, %7 : vector<8x128xf32>
    %9 = arith.truncf %8 : vector<8x128xf32> to vector<8x128xbf16>
    %c0_6 = arith.constant 0 : index
    %c0_7 = arith.constant 0 : index
    %10 = vector.load %arg4[%c0_6, %c0_7] : memref<128x128xbf16, #tpu.memory_space<vmem>>, vector<128x128xbf16>
    %cst_8 = arith.constant dense<0.000000e+00> : vector<8x128xf32>
    %11 = tpu.matmul %9, %10, %cst_8 {dimension_numbers = #tpu.dot_dimension_numbers<[1], [0], [0], [1], [0, 0, 1, 1], [], []>} : vector<8x128xbf16>, vector<128x128xbf16>, vector<8x128xf32> -> vector<8x128xf32>
    %c0_9 = arith.constant 0 : index
    %c0_10 = arith.constant 0 : index
    %12 = vector.load %arg5[%c0_9, %c0_10] : memref<1x128xf32, #tpu.memory_space<vmem>>, vector<1x128xf32>
    %13 = vector.broadcast %12 : vector<1x128xf32> to vector<8x128xf32>
    %14 = arith.addf %11, %13 : vector<8x128xf32>
    %cst_11 = arith.constant 0.000000e+00 : f32
    %15 = vector.broadcast %cst_11 : f32 to vector<8x128xf32>
    %16 = arith.maximumf %14, %15 : vector<8x128xf32>
    %17 = arith.truncf %16 : vector<8x128xf32> to vector<8x128xbf16>
    %c0_12 = arith.constant 0 : index
    %c0_13 = arith.constant 0 : index
    %18 = vector.load %arg6[%c0_12, %c0_13] : memref<128x128xbf16, #tpu.memory_space<vmem>>, vector<128x128xbf16>
    %cst_14 = arith.constant dense<0.000000e+00> : vector<8x128xf32>
    %19 = tpu.matmul %17, %18, %cst_14 {dimension_numbers = #tpu.dot_dimension_numbers<[1], [0], [0], [1], [0, 0, 1, 1], [], []>} : vector<8x128xbf16>, vector<128x128xbf16>, vector<8x128xf32> -> vector<8x128xf32>
    %c0_15 = arith.constant 0 : index
    %c0_16 = arith.constant 0 : index
    %20 = vector.load %arg7[%c0_15, %c0_16] : memref<1x128xf32, #tpu.memory_space<vmem>>, vector<1x128xf32>
    %21 = vector.broadcast %20 : vector<1x128xf32> to vector<8x128xf32>
    %22 = arith.addf %19, %21 : vector<8x128xf32>
    %cst_17 = arith.constant 0.000000e+00 : f32
    %23 = vector.broadcast %cst_17 : f32 to vector<8x128xf32>
    %24 = arith.maximumf %22, %23 : vector<8x128xf32>
    %25 = arith.truncf %24 : vector<8x128xf32> to vector<8x128xbf16>
    %c0_18 = arith.constant 0 : index
    %c0_19 = arith.constant 0 : index
    %26 = vector.load %arg8[%c0_18, %c0_19] : memref<128x128xbf16, #tpu.memory_space<vmem>>, vector<128x128xbf16>
    %cst_20 = arith.constant dense<0.000000e+00> : vector<8x128xf32>
    %27 = tpu.matmul %25, %26, %cst_20 {dimension_numbers = #tpu.dot_dimension_numbers<[1], [0], [0], [1], [0, 0, 1, 1], [], []>} : vector<8x128xbf16>, vector<128x128xbf16>, vector<8x128xf32> -> vector<8x128xf32>
    %c0_21 = arith.constant 0 : index
    %c0_22 = arith.constant 0 : index
    %28 = vector.load %arg9[%c0_21, %c0_22] : memref<1x128xf32, #tpu.memory_space<vmem>>, vector<1x128xf32>
    %29 = vector.broadcast %28 : vector<1x128xf32> to vector<8x128xf32>
    %30 = arith.addf %27, %29 : vector<8x128xf32>
    %31 = arith.truncf %30 : vector<8x128xf32> to vector<8x128xbf16>
    %c0_23 = arith.constant 0 : index
    %c0_24 = arith.constant 0 : index
    %32 = vector.load %arg10[%c0_23, %c0_24] : memref<8x128xbf16, #tpu.memory_space<vmem>>, vector<8x128xbf16>
    tpu.vector_store %arg10[%c0_23, %c0_24], %31 {strides = array<i32>} : memref<8x128xbf16, #tpu.memory_space<vmem>>, vector<8x128xbf16>,
    return
  }
  func.func @transform_0(%arg0: i32) -> (i32, i32) {
    %c0_i32 = arith.constant 0 : i32
    %c0_i32_0 = arith.constant 0 : i32
    return %arg0, %c0_i32 : i32, i32
  }
  func.func @transform_1(%arg0: i32) -> (i32, i32) {
    %c0_i32 = arith.constant 0 : i32
    %c0_i32_0 = arith.constant 0 : i32
    %c0_i32_1 = arith.constant 0 : i32
    return %c0_i32, %c0_i32_0 : i32, i32
  }
  func.func @transform_2(%arg0: i32) -> (i32, i32) {
    %c0_i32 = arith.constant 0 : i32
    %c0_i32_0 = arith.constant 0 : i32
    %c0_i32_1 = arith.constant 0 : i32
    return %c0_i32, %c0_i32_0 : i32, i32
  }
  func.func @transform_3(%arg0: i32) -> (i32, i32) {
    %c0_i32 = arith.constant 0 : i32
    %c0_i32_0 = arith.constant 0 : i32
    %c0_i32_1 = arith.constant 0 : i32
    return %c0_i32, %c0_i32_0 : i32, i32
  }
  func.func @transform_4(%arg0: i32) -> (i32, i32) {
    %c0_i32 = arith.constant 0 : i32
    %c0_i32_0 = arith.constant 0 : i32
    %c0_i32_1 = arith.constant 0 : i32
    return %c0_i32, %c0_i32_0 : i32, i32
  }
  func.func @transform_5(%arg0: i32) -> (i32, i32) {
    %c0_i32 = arith.constant 0 : i32
    %c0_i32_0 = arith.constant 0 : i32
    %c0_i32_1 = arith.constant 0 : i32
    return %c0_i32, %c0_i32_0 : i32, i32
  }
  func.func @transform_6(%arg0: i32) -> (i32, i32) {
    %c0_i32 = arith.constant 0 : i32
    %c0_i32_0 = arith.constant 0 : i32
    %c0_i32_1 = arith.constant 0 : i32
    return %c0_i32, %c0_i32_0 : i32, i32
  }
  func.func @transform_7(%arg0: i32) -> (i32, i32) {
    %c0_i32 = arith.constant 0 : i32
    %c0_i32_0 = arith.constant 0 : i32
    %c0_i32_1 = arith.constant 0 : i32
    return %c0_i32, %c0_i32_0 : i32, i32
  }
  func.func @transform_8(%arg0: i32) -> (i32, i32) {
    %c0_i32 = arith.constant 0 : i32
    %c0_i32_0 = arith.constant 0 : i32
    %c0_i32_1 = arith.constant 0 : i32
    return %c0_i32, %c0_i32_0 : i32, i32
  }
  func.func @transform_9(%arg0: i32) -> (i32, i32) {
    %c0_i32 = arith.constant 0 : i32
    %c0_i32_0 = arith.constant 0 : i32
    return %arg0, %c0_i32 : i32, i32
  }
}

</mosaic_0001>

<llo_original>
// kernel: predictor_forward.1
$region0: #{predictor_forward.1}
  #allocation0 [shape = 'u32[]', space=smem, size = 0x4, offset = 0x4, fixed_abs, tag = 'smem constant byte address 0x4 - core index']
  #allocation1 [shape = 'u32[144,128]{1,0:T(1,128)}', space=vmem, size = 0x12000, scoped, tag = 'internal scratch']
  %s0 = inlined_call_operand.hbm [shape: f32[8,32], index: 0, kind: input, shape index: {}]
  %s1 = inlined_call_operand.vmem [shape: bf16[32,128], index: 1, kind: input, shape index: {}]
  %s2 = inlined_call_operand.vmem [shape: f32[1,128], index: 2, kind: input, shape index: {}]
  %s3 = inlined_call_operand.hbm [shape: bf16[128,128], index: 3, kind: input, shape index: {}]
  %s4 = inlined_call_operand.vmem [shape: f32[1,128], index: 4, kind: input, shape index: {}]
  %s5 = inlined_call_operand.hbm [shape: bf16[128,128], index: 5, kind: input, shape index: {}]
  %s6 = inlined_call_operand.vmem [shape: f32[1,128], index: 6, kind: input, shape index: {}]
  %s7 = inlined_call_operand.hbm [shape: bf16[128,128], index: 7, kind: input, shape index: {}]
  %s8 = inlined_call_operand.vmem [shape: f32[1,128], index: 8, kind: input, shape index: {}]
  %s9 = inlined_call_operand.hbm [shape: bf16[8,128], index: 9, kind: output, shape index: {}]
  %s10 = sld [smem:[#allocation0]]
  $region62: #{predictor_forward.1} parent=0
    _
  %s12 = ssub.s32 1, %s10
  %s13 = scalar_select 0, %s12, %s10
  $region1: #{predictor_forward.1} parent=0
    #allocation2 [shape = 'u8[4096]{0}', space=vmem, size = 0x1000, scoped, tag = 'input window, operand 0, single buffered']
    #allocation3 [shape = 's32[1]{0}', space=sflag, size = 0x4, scoped, tag = 'scoped memory for predictor_forward.1']
    #allocation4 [shape = 's32[1]{0}', space=sflag, size = 0x4, scoped, tag = 'scoped memory for predictor_forward.1']
    #allocation5 [shape = 'u8[32768]{0}', space=vmem, size = 0x8000, scoped, tag = 'input window, operand 3, single buffered']
    #allocation6 [shape = 's32[1]{0}', space=sflag, size = 0x4, scoped, tag = 'scoped memory for predictor_forward.1']
    #allocation7 [shape = 'u8[32768]{0}', space=vmem, size = 0x8000, scoped, tag = 'input window, operand 5, single buffered']
    #allocation8 [shape = 'u8[32768]{0}', space=vmem, size = 0x8000, scoped, tag = 'input window, operand 7, single buffered']
    #allocation9 [shape = 's32[1]{0}', space=sflag, size = 0x4, scoped, tag = 'scoped memory for predictor_forward.1']
    #allocation10 [shape = 'u8[2048]{0}', space=vmem, size = 0x800, scoped, tag = 'output window, operand 0, single buffered']
    %14 = vsyncpa [#allocation3], 0
    %15 = vsyncpa [#allocation6], 0
    %16 = vsyncpa [#allocation9], 0
    %17 = vsyncpa [#allocation4], 0
    // Predicated region
    $region2: #{predictor_forward.1} parent=1 // pred_check
      _
    $region3: #{predictor_forward.1} parent=1 // pred_check_branch
      %19 = sbr.rel (0) target = $region5
    $region4: #{predictor_forward.1} parent=1 // pred_region
      %s21 = ssub.s32 128, 128
      %22 = vsyncadd [#allocation3], %s21
      %s24 = sshll.u32 [#allocation2], 4
      %s25 = int_to_ptr.vmem [resolvable:$true] %s24
      %27 = dma.hbm_to_vmem [thread:$0]  %s0, 128, %s25, [#allocation3]
    $region5: #{predictor_forward.1} parent=1 // pred_fallthru
      _
    // Predicated region
    $region6: #{predictor_forward.1} parent=1 // pred_check
      _
    $region7: #{predictor_forward.1} parent=1 // pred_check_branch
      %29 = sbr.rel (0) target = $region9
    $region8: #{predictor_forward.1} parent=1 // pred_region
      _
    $region9: #{predictor_forward.1} parent=1 // pred_fallthru
      _
    // Predicated region
    $region10: #{predictor_forward.1} parent=1 // pred_check
      _
    $region11: #{predictor_forward.1} parent=1 // pred_check_branch
      %31 = sbr.rel (0) target = $region13
    $region12: #{predictor_forward.1} parent=1 // pred_region
      _
    $region13: #{predictor_forward.1} parent=1 // pred_fallthru
      _
    // Predicated region
    $region14: #{predictor_forward.1} parent=1 // pred_check
      _
    $region15: #{predictor_forward.1} parent=1 // pred_check_branch
      %33 = sbr.rel (0) target = $region17
    $region16: #{predictor_forward.1} parent=1 // pred_region
      %s35 = ssub.s32 1024, 1024
      %36 = vsyncadd [#allocation6], %s35
      %s37 = sshll.u32 [#allocation5], 4
      %s38 = int_to_ptr.vmem [resolvable:$true] %s37
      %43 = dma.hbm_to_vmem [thread:$0]  %s3, 1024, %s38, [#allocation6], 64, 64, 4
    $region17: #{predictor_forward.1} parent=1 // pred_fallthru
      _
    // Predicated region
    $region18: #{predictor_forward.1} parent=1 // pred_check
      _
    $region19: #{predictor_forward.1} parent=1 // pred_check_branch
      %45 = sbr.rel (0) target = $region21
    $region20: #{predictor_forward.1} parent=1 // pred_region
      _
    $region21: #{predictor_forward.1} parent=1 // pred_fallthru
      _
    // Predicated region
    $region22: #{predictor_forward.1} parent=1 // pred_check
      _
    $region23: #{predictor_forward.1} parent=1 // pred_check_branch
      %47 = sbr.rel (0) target = $region25
    $region24: #{predictor_forward.1} parent=1 // pred_region
      %s49 = ssub.s32 1024, 1024
      %50 = vsyncadd [#allocation6], %s49
      %s51 = sshll.u32 [#allocation7], 4
      %s52 = int_to_ptr.vmem [resolvable:$true] %s51
      %57 = dma.hbm_to_vmem [thread:$0]  %s5, 1024, %s52, [#allocation6], 64, 64, 4
    $region25: #{predictor_forward.1} parent=1 // pred_fallthru
      _
    // Predicated region
    $region26: #{predictor_forward.1} parent=1 // pred_check
      _
    $region27: #{predictor_forward.1} parent=1 // pred_check_branch
      %59 = sbr.rel (0) target = $region29
    $region28: #{predictor_forward.1} parent=1 // pred_region
      _
    $region29: #{predictor_forward.1} parent=1 // pred_fallthru
      _
    // Predicated region
    $region30: #{predictor_forward.1} parent=1 // pred_check
      _
    $region31: #{predictor_forward.1} parent=1 // pred_check_branch
      %61 = sbr.rel (0) target = $region33
    $region32: #{predictor_forward.1} parent=1 // pred_region
      %s63 = ssub.s32 1024, 1024
      %64 = vsyncadd [#allocation9], %s63
      %s65 = sshll.u32 [#allocation8], 4
      %s66 = int_to_ptr.vmem [resolvable:$true] %s65
      %71 = dma.hbm_to_vmem [thread:$0]  %s7, 1024, %s66, [#allocation9], 64, 64, 4
    $region33: #{predictor_forward.1} parent=1 // pred_fallthru
      _
    // Predicated region
    $region34: #{predictor_forward.1} parent=1 // pred_check
      _
    $region35: #{predictor_forward.1} parent=1 // pred_check_branch
      %73 = sbr.rel (0) target = $region37
    $region36: #{predictor_forward.1} parent=1 // pred_region
      _
    $region37: #{predictor_forward.1} parent=1 // pred_fallthru
      _
    // Predicated region
    $region38: #{predictor_forward.1} parent=1 // pred_check
      _
    $region39: #{predictor_forward.1} parent=1 // pred_check_branch
      %75 = sbr.rel (0) target = $region41
    $region40: #{predictor_forward.1} parent=1 // pred_region
      %76 = dma.done [#allocation3], 128
    $region41: #{predictor_forward.1} parent=1 // pred_fallthru
      _
    // Predicated region
    $region42: #{predictor_forward.1} parent=1 // pred_check
      _
    $region43: #{predictor_forward.1} parent=1 // pred_check_branch
      %78 = sbr.rel (0) target = $region45
    $region44: #{predictor_forward.1} parent=1 // pred_region
      %79 = dma.done [#allocation6], 1024
    $region45: #{predictor_forward.1} parent=1 // pred_fallthru
      _
    // Predicated region
    $region46: #{predictor_forward.1} parent=1 // pred_check
      _
    $region47: #{predictor_forward.1} parent=1 // pred_check_branch
      %81 = sbr.rel (0) target = $region49
    $region48: #{predictor_forward.1} parent=1 // pred_region
      %82 = dma.done [#allocation6], 1024
    $region49: #{predictor_forward.1} parent=1 // pred_fallthru
      _
    // Predicated region
    $region50: #{predictor_forward.1} parent=1 // pred_check
      _
    $region51: #{predictor_forward.1} parent=1 // pred_check_branch
      %84 = sbr.rel (0) target = $region53
    $region52: #{predictor_forward.1} parent=1 // pred_region
      %85 = dma.done [#allocation9], 1024
    $region53: #{predictor_forward.1} parent=1 // pred_fallthru
      _
    %v87 = vld [vmem:[#allocation2] sm:$0xff]
    %v88 = vpack.c.bf16 %v87, %v87
    %v89 = vld [vmem:[%s1] sm:$0xf]
    %v90 = vld [vmem:[%s1 + $0x4] sm:$0xf]
    %v91 = vld [vmem:[%s1 + $0x8] sm:$0xf]
    %v92 = vld [vmem:[%s1 + $0xc] sm:$0xf]
    %v93 = vld [vmem:[%s2] sm:$0x1]
    %v95 = vlaneseq
    %v96 = vshrl.u32 %v95, 7
    %v97 = vsub.s32 0, %v96
    %v98 = vrot.slane %v93, %v97
    %v104 = vunpack.c.l.b16 %v89
    %v105 = vunpack.c.l.b16 %v90
    %v106 = vunpack.c.l.b16 %v91
    %v107 = vunpack.c.l.b16 %v92
    %v108 = vpack.c.b16 %v105, %v104
    %v109 = vpack.c.b16 %v107, %v106
    %vm112 = vcmask 261120
    %v114 = vsel %vm112, %v88, 0
    %116 = vmatprep.subr.bf16.mxu0 0
    %117 = vmatpush1.bf16.msra.mxu0 %v108
    %118 = vmatprep.subr.bf16.mxu0 0
    %119 = vmatpush1.bf16.msra.mxu0 %v109
    %120 = vmatprep.subr.bf16.mxu0 0
    %121 = vmatpush1.bf16.msra.mxu0 0
    %122 = vmatprep.subr.bf16.mxu0 0
    %123 = vmatpush1.bf16.msra.mxu0 0
    %124 = vmatprep.subr.bf16.mxu0 0
    %125 = vmatpush1.bf16.msra.mxu0 0
    %126 = vmatprep.subr.bf16.mxu0 0
    %127 = vmatpush1.bf16.msra.mxu0 0
    %128 = vmatprep.subr.bf16.mxu0 0
    %129 = vmatpush1.bf16.msra.mxu0 0
    %130 = vmatprep.subr.bf16.mxu0 0
    %131 = vmatpush1.bf16.msra.mxu0 0
    %132 = vmatprep.subr.bf16.mxu0 0
    %133 = vmatpush1.bf16.msra.mxu0 0
    %134 = vmatprep.subr.bf16.mxu0 0
    %135 = vmatpush1.bf16.msra.mxu0 0
    %136 = vmatprep.subr.bf16.mxu0 0
    %137 = vmatpush1.bf16.msra.mxu0 0
    %138 = vmatprep.subr.bf16.mxu0 0
    %139 = vmatpush1.bf16.msra.mxu0 0
    %140 = vmatprep.subr.bf16.mxu0 0
    %141 = vmatpush1.bf16.msra.mxu0 0
    %142 = vmatprep.subr.bf16.mxu0 0
    %143 = vmatpush1.bf16.msra.mxu0 0
    %144 = vmatprep.subr.bf16.mxu0 0
    %145 = vmatpush1.bf16.msra.mxu0 0
    %146 = vmatprep.subr.bf16.mxu0 0
    %147 = vmatpush1.bf16.msra.mxu0 0
    %148 = vmatprep.mubr.bf16.mxu0 0
    %149 = vmatmul.mubr.bf16.gmra.mrb[0].mxu0 %v114
    %v150 = vpop.f32.mrb[0].mxu0
    %v151 = vadd.f32 %v98, %v150
    %v152 = vpop.f32.mrb[0].mxu0
    %v153 = vpop.f32.mrb[0].mxu0
    %v154 = vpop.f32.mrb[0].mxu0
    %155 = vdwg.mxu0
    %v156 = vmax.f32 %v151, 0.0
    %v157 = vpack.c.bf16 %v156, %v156
    %v158 = vld [vmem:[#allocation5] sm:$0xf]
    %v159 = vld [vmem:[#allocation5 + $0x4] sm:$0xf]
    %v160 = vld [vmem:[#allocation5 + $0x8] sm:$0xf]
    %v161 = vld [vmem:[#allocation5 + $0xc] sm:$0xf]
    %v162 = vld [vmem:[#allocation5 + $0x10] sm:$0xf]
    %v163 = vld [vmem:[#allocation5 + $0x14] sm:$0xf]
    %v164 = vld [vmem:[#allocation5 + $0x18] sm:$0xf]
    %v165 = vld [vmem:[#allocation5 + $0x1c] sm:$0xf]
    %v166 = vld [vmem:[#allocation5 + $0x20] sm:$0xf]
    %v167 = vld [vmem:[#allocation5 + $0x24] sm:$0xf]
    %v168 = vld [vmem:[#allocation5 + $0x28] sm:$0xf]
    %v169 = vld [vmem:[#allocation5 + $0x2c] sm:$0xf]
    %v170 = vld [vmem:[#allocation5 + $0x30] sm:$0xf]
    %v171 = vld [vmem:[#allocation5 + $0x34] sm:$0xf]
    %v172 = vld [vmem:[#allocation5 + $0x38] sm:$0xf]
    %v173 = vld [vmem:[#allocation5 + $0x3c] sm:$0xf]
    %v174 = vld [vmem:[%s4] sm:$0x1]
    %v176 = vlaneseq
    %v177 = vshrl.u32 %v176, 7
    %v178 = vsub.s32 0, %v177
    %v179 = vrot.slane %v174, %v178
    %v197 = vunpack.c.l.b16 %v158
    %v198 = vunpack.c.l.b16 %v159
    %v199 = vunpack.c.l.b16 %v160
    %v200 = vunpack.c.l.b16 %v161
    %v201 = vunpack.c.l.b16 %v162
    %v202 = vunpack.c.l.b16 %v163
    %v203 = vunpack.c.l.b16 %v164
    %v204 = vunpack.c.l.b16 %v165
    %v205 = vunpack.c.l.b16 %v166
    %v206 = vunpack.c.l.b16 %v167
    %v207 = vunpack.c.l.b16 %v168
    %v208 = vunpack.c.l.b16 %v169
    %v209 = vunpack.c.l.b16 %v170
    %v210 = vunpack.c.l.b16 %v171
    %v211 = vunpack.c.l.b16 %v172
    %v212 = vunpack.c.l.b16 %v173
    %v213 = vpack.c.b16 %v198, %v197
    %v214 = vpack.c.b16 %v200, %v199
    %v215 = vpack.c.b16 %v202, %v201
    %v216 = vpack.c.b16 %v204, %v203
    %v217 = vpack.c.b16 %v206, %v205
    %v218 = vpack.c.b16 %v208, %v207
    %v219 = vpack.c.b16 %v210, %v209
    %v220 = vpack.c.b16 %v212, %v211
    %229 = vmatprep.subr.bf16.mxu0 0
    %230 = vmatpush1.bf16.msra.mxu0 %v213
    %231 = vmatprep.subr.bf16.mxu0 0
    %232 = vmatpush1.bf16.msra.mxu0 %v214
    %233 = vmatprep.subr.bf16.mxu0 0
    %234 = vmatpush1.bf16.msra.mxu0 %v215
    %235 = vmatprep.subr.bf16.mxu0 0
    %236 = vmatpush1.bf16.msra.mxu0 %v216
    %237 = vmatprep.subr.bf16.mxu0 0
    %238 = vmatpush1.bf16.msra.mxu0 %v217
    %239 = vmatprep.subr.bf16.mxu0 0
    %240 = vmatpush1.bf16.msra.mxu0 %v218
    %241 = vmatprep.subr.bf16.mxu0 0
    %242 = vmatpush1.bf16.msra.mxu0 %v219
    %243 = vmatprep.subr.bf16.mxu0 0
    %244 = vmatpush1.bf16.msra.mxu0 %v220
    %245 = vmatprep.subr.bf16.mxu0 0
    %246 = vmatpush1.bf16.msra.mxu0 0
    %247 = vmatprep.subr.bf16.mxu0 0
    %248 = vmatpush1.bf16.msra.mxu0 0
    %249 = vmatprep.subr.bf16.mxu0 0
    %250 = vmatpush1.bf16.msra.mxu0 0
    %251 = vmatprep.subr.bf16.mxu0 0
    %252 = vmatpush1.bf16.msra.mxu0 0
    %253 = vmatprep.subr.bf16.mxu0 0
    %254 = vmatpush1.bf16.msra.mxu0 0
    %255 = vmatprep.subr.bf16.mxu0 0
    %256 = vmatpush1.bf16.msra.mxu0 0
    %257 = vmatprep.subr.bf16.mxu0 0
    %258 = vmatpush1.bf16.msra.mxu0 0
    %259 = vmatprep.subr.bf16.mxu0 0
    %260 = vmatpush1.bf16.msra.mxu0 0
    %261 = vmatprep.mubr.bf16.mxu0 0
    %262 = vmatmul.mubr.bf16.gmra.mrb[0].mxu0 %v157
    %v263 = vpop.f32.mrb[0].mxu0
    %v264 = vadd.f32 %v179, %v263
    %v265 = vpop.f32.mrb[0].mxu0
    %v266 = vpop.f32.mrb[0].mxu0
    %v267 = vpop.f32.mrb[0].mxu0
    %268 = vdwg.mxu0
    %v269 = vmax.f32 %v264, 0.0
    %v270 = vpack.c.bf16 %v269, %v269
    %v271 = vld [vmem:[#allocation7] sm:$0xf]
    %v272 = vld [vmem:[#allocation7 + $0x4] sm:$0xf]
    %v273 = vld [vmem:[#allocation7 + $0x8] sm:$0xf]
    %v274 = vld [vmem:[#allocation7 + $0xc] sm:$0xf]
    %v275 = vld [vmem:[#allocation7 + $0x10] sm:$0xf]
    %v276 = vld [vmem:[#allocation7 + $0x14] sm:$0xf]
    %v277 = vld [vmem:[#allocation7 + $0x18] sm:$0xf]
    %v278 = vld [vmem:[#allocation7 + $0x1c] sm:$0xf]
    %v279 = vld [vmem:[#allocation7 + $0x20] sm:$0xf]
    %v280 = vld [vmem:[#allocation7 + $0x24] sm:$0xf]
    %v281 = vld [vmem:[#allocation7 + $0x28] sm:$0xf]
    %v282 = vld [vmem:[#allocation7 + $0x2c] sm:$0xf]
    %v283 = vld [vmem:[#allocation7 + $0x30] sm:$0xf]
    %v284 = vld [vmem:[#allocation7 + $0x34] sm:$0xf]
    %v285 = vld [vmem:[#allocation7 + $0x38] sm:$0xf]
    %v286 = vld [vmem:[#allocation7 + $0x3c] sm:$0xf]
    %v287 = vld [vmem:[%s6] sm:$0x1]
    %v289 = vlaneseq
    %v290 = vshrl.u32 %v289, 7
    %v291 = vsub.s32 0, %v290
    %v292 = vrot.slane %v287, %v291
    %v310 = vunpack.c.l.b16 %v271
    %v311 = vunpack.c.l.b16 %v272
    %v312 = vunpack.c.l.b16 %v273
    %v313 = vunpack.c.l.b16 %v274
    %v314 = vunpack.c.l.b16 %v275
    %v315 = vunpack.c.l.b16 %v276
    %v316 = vunpack.c.l.b16 %v277
    %v317 = vunpack.c.l.b16 %v278
    %v318 = vunpack.c.l.b16 %v279
    %v319 = vunpack.c.l.b16 %v280
    %v320 = vunpack.c.l.b16 %v281
    %v321 = vunpack.c.l.b16 %v282
    %v322 = vunpack.c.l.b16 %v283
    %v323 = vunpack.c.l.b16 %v284
    %v324 = vunpack.c.l.b16 %v285
    %v325 = vunpack.c.l.b16 %v286
    %v326 = vpack.c.b16 %v311, %v310
    %v327 = vpack.c.b16 %v313, %v312
    %v328 = vpack.c.b16 %v315, %v314
    %v329 = vpack.c.b16 %v317, %v316
    %v330 = vpack.c.b16 %v319, %v318
    %v331 = vpack.c.b16 %v321, %v320
    %v332 = vpack.c.b16 %v323, %v322
    %v333 = vpack.c.b16 %v325, %v324
    %342 = vmatprep.subr.bf16.mxu0 0
    %343 = vmatpush1.bf16.msra.mxu0 %v326
    %344 = vmatprep.subr.bf16.mxu0 0
    %345 = vmatpush1.bf16.msra.mxu0 %v327
    %346 = vmatprep.subr.bf16.mxu0 0
    %347 = vmatpush1.bf16.msra.mxu0 %v328
    %348 = vmatprep.subr.bf16.mxu0 0
    %349 = vmatpush1.bf16.msra.mxu0 %v329
    %350 = vmatprep.subr.bf16.mxu0 0
    %351 = vmatpush1.bf16.msra.mxu0 %v330
    %352 = vmatprep.subr.bf16.mxu0 0
    %353 = vmatpush1.bf16.msra.mxu0 %v331
    %354 = vmatprep.subr.bf16.mxu0 0
    %355 = vmatpush1.bf16.msra.mxu0 %v332
    %356 = vmatprep.subr.bf16.mxu0 0
    %357 = vmatpush1.bf16.msra.mxu0 %v333
    %358 = vmatprep.subr.bf16.mxu0 0
    %359 = vmatpush1.bf16.msra.mxu0 0
    %360 = vmatprep.subr.bf16.mxu0 0
    %361 = vmatpush1.bf16.msra.mxu0 0
    %362 = vmatprep.subr.bf16.mxu0 0
    %363 = vmatpush1.bf16.msra.mxu0 0
    %364 = vmatprep.subr.bf16.mxu0 0
    %365 = vmatpush1.bf16.msra.mxu0 0
    %366 = vmatprep.subr.bf16.mxu0 0
    %367 = vmatpush1.bf16.msra.mxu0 0
    %368 = vmatprep.subr.bf16.mxu0 0
    %369 = vmatpush1.bf16.msra.mxu0 0
    %370 = vmatprep.subr.bf16.mxu0 0
    %371 = vmatpush1.bf16.msra.mxu0 0
    %372 = vmatprep.subr.bf16.mxu0 0
    %373 = vmatpush1.bf16.msra.mxu0 0
    %374 = vmatprep.mubr.bf16.mxu0 0
    %375 = vmatmul.mubr.bf16.gmra.mrb[0].mxu0 %v270
    %v376 = vpop.f32.mrb[0].mxu0
    %v377 = vadd.f32 %v292, %v376
    %v378 = vpop.f32.mrb[0].mxu0
    %v379 = vpop.f32.mrb[0].mxu0
    %v380 = vpop.f32.mrb[0].mxu0
    %381 = vdwg.mxu0
    %v382 = vmax.f32 %v377, 0.0
    %v383 = vpack.c.bf16 %v382, %v382
    %v384 = vld [vmem:[#allocation8] sm:$0xf]
    %v385 = vld [vmem:[#allocation8 + $0x4] sm:$0xf]
    %v386 = vld [vmem:[#allocation8 + $0x8] sm:$0xf]
    %v387 = vld [vmem:[#allocation8 + $0xc] sm:$0xf]
    %v388 = vld [vmem:[#allocation8 + $0x10] sm:$0xf]
    %v389 = vld [vmem:[#allocation8 + $0x14] sm:$0xf]
    %v390 = vld [vmem:[#allocation8 + $0x18] sm:$0xf]
    %v391 = vld [vmem:[#allocation8 + $0x1c] sm:$0xf]
    %v392 = vld [vmem:[#allocation8 + $0x20] sm:$0xf]
    %v393 = vld [vmem:[#allocation8 + $0x24] sm:$0xf]
    %v394 = vld [vmem:[#allocation8 + $0x28] sm:$0xf]
    %v395 = vld [vmem:[#allocation8 + $0x2c] sm:$0xf]
    %v396 = vld [vmem:[#allocation8 + $0x30] sm:$0xf]
    %v397 = vld [vmem:[#allocation8 + $0x34] sm:$0xf]
    %v398 = vld [vmem:[#allocation8 + $0x38] sm:$0xf]
    %v399 = vld [vmem:[#allocation8 + $0x3c] sm:$0xf]
    %v400 = vld [vmem:[%s8] sm:$0x1]
    %v402 = vlaneseq
    %v403 = vshrl.u32 %v402, 7
    %v404 = vsub.s32 0, %v403
    %v405 = vrot.slane %v400, %v404
    %v423 = vunpack.c.l.b16 %v384
    %v424 = vunpack.c.l.b16 %v385
    %v425 = vunpack.c.l.b16 %v386
    %v426 = vunpack.c.l.b16 %v387
    %v427 = vunpack.c.l.b16 %v388
    %v428 = vunpack.c.l.b16 %v389
    %v429 = vunpack.c.l.b16 %v390
    %v430 = vunpack.c.l.b16 %v391
    %v431 = vunpack.c.l.b16 %v392
    %v432 = vunpack.c.l.b16 %v393
    %v433 = vunpack.c.l.b16 %v394
    %v434 = vunpack.c.l.b16 %v395
    %v435 = vunpack.c.l.b16 %v396
    %v436 = vunpack.c.l.b16 %v397
    %v437 = vunpack.c.l.b16 %v398
    %v438 = vunpack.c.l.b16 %v399
    %v439 = vpack.c.b16 %v424, %v423
    %v440 = vpack.c.b16 %v426, %v425
    %v441 = vpack.c.b16 %v428, %v427
    %v442 = vpack.c.b16 %v430, %v429
    %v443 = vpack.c.b16 %v432, %v431
    %v444 = vpack.c.b16 %v434, %v433
    %v445 = vpack.c.b16 %v436, %v435
    %v446 = vpack.c.b16 %v438, %v437
    %455 = vmatprep.subr.bf16.mxu0 0
    %456 = vmatpush1.bf16.msra.mxu0 %v439
    %457 = vmatprep.subr.bf16.mxu0 0
    %458 = vmatpush1.bf16.msra.mxu0 %v440
    %459 = vmatprep.subr.bf16.mxu0 0
    %460 = vmatpush1.bf16.msra.mxu0 %v441
    %461 = vmatprep.subr.bf16.mxu0 0
    %462 = vmatpush1.bf16.msra.mxu0 %v442
    %463 = vmatprep.subr.bf16.mxu0 0
    %464 = vmatpush1.bf16.msra.mxu0 %v443
    %465 = vmatprep.subr.bf16.mxu0 0
    %466 = vmatpush1.bf16.msra.mxu0 %v444
    %467 = vmatprep.subr.bf16.mxu0 0
    %468 = vmatpush1.bf16.msra.mxu0 %v445
    %469 = vmatprep.subr.bf16.mxu0 0
    %470 = vmatpush1.bf16.msra.mxu0 %v446
    %471 = vmatprep.subr.bf16.mxu0 0
    %472 = vmatpush1.bf16.msra.mxu0 0
    %473 = vmatprep.subr.bf16.mxu0 0
    %474 = vmatpush1.bf16.msra.mxu0 0
    %475 = vmatprep.subr.bf16.mxu0 0
    %476 = vmatpush1.bf16.msra.mxu0 0
    %477 = vmatprep.subr.bf16.mxu0 0
    %478 = vmatpush1.bf16.msra.mxu0 0
    %479 = vmatprep.subr.bf16.mxu0 0
    %480 = vmatpush1.bf16.msra.mxu0 0
    %481 = vmatprep.subr.bf16.mxu0 0
    %482 = vmatpush1.bf16.msra.mxu0 0
    %483 = vmatprep.subr.bf16.mxu0 0
    %484 = vmatpush1.bf16.msra.mxu0 0
    %485 = vmatprep.subr.bf16.mxu0 0
    %486 = vmatpush1.bf16.msra.mxu0 0
    %487 = vmatprep.mubr.bf16.mxu0 0
    %488 = vmatmul.mubr.bf16.gmra.mrb[0].mxu0 %v383
    %v489 = vpop.f32.mrb[0].mxu0
    %v490 = vadd.f32 %v405, %v489
    %v491 = vpop.f32.mrb[0].mxu0
    %v492 = vpop.f32.mrb[0].mxu0
    %v493 = vpop.f32.mrb[0].mxu0
    %494 = vdwg.mxu0
    %v495 = vpack.c.bf16 %v490, %v490
    %496 = vst [vmem:[#allocation10] sm:$0xf] %v495
    // Predicated region
    $region54: #{predictor_forward.1} parent=1 // pred_check
      _
    $region55: #{predictor_forward.1} parent=1 // pred_check_branch
      %498 = sbr.rel (0) target = $region57
    $region56: #{predictor_forward.1} parent=1 // pred_region
      %s500 = ssub.s32 64, 64
      %501 = vsyncadd [#allocation4], %s500
      %s503 = sshll.u32 [#allocation10], 4
      %s504 = int_to_ptr.vmem [resolvable:$true] %s503
      %506 = dma.vmem_to_hbm [thread:$0]  %s504, 64, %s9, [#allocation4]
    $region57: #{predictor_forward.1} parent=1 // pred_fallthru
      _
    // Predicated region
    $region58: #{predictor_forward.1} parent=1 // pred_check
      _
    $region59: #{predictor_forward.1} parent=1 // pred_check_branch
      %508 = sbr.rel (0) target = $region61
    $region60: #{predictor_forward.1} parent=1 // pred_region
      %509 = dma.done [#allocation4], 64
    $region61: #{predictor_forward.1} parent=1 // pred_fallthru
      _
    %510 = vsyncpa [#allocation3], 1
    %511 = vsyncpa [#allocation6], 1
    %512 = vsyncpa [#allocation9], 1
    %513 = vsyncpa [#allocation4], 1

</llo_original>
